<compile_context>
chip_gen: v7x
topology: tpu7x:2x2x1
jax: 0.10.0
libtpu: 0.0.40
codegen_flags: <defaults>
</compile_context>

<pallas_src>
import jax
import jax.numpy as jnp
from jax.experimental import pallas as pl
from jax.experimental.pallas import tpu as pltpu


def _single_core_attn_kernel(w_ref, q_ref, kt_ref, v_ref, out_ref, attn_ref,
                             ksum_ref):
    kb = pl.program_id(1)

    # Cast Q once; reused by both MXU contractions.
    q16 = q_ref[...].astype(jnp.bfloat16)                  # (Bb, L, D)
    kt = kt_ref[...]                                       # (Bb, D, Kt) f32

    # attn tile = Q @ K^T.  K arrives pre-transposed, so the contraction is
    # LHS-last vs RHS-first: a straight MXU matmul, no in-kernel transpose.
    attn = jnp.einsum('bld,bdk->blk', q16, kt.astype(jnp.bfloat16),
                      preferred_element_type=jnp.float32)
    attn_ref[...] = attn.astype(attn_ref.dtype)

    # Accumulate Ksum[b, t] = sum_j K[b, j, t] across key tiles (f32).
    @pl.when(kb == 0)
    def _():
        ksum_ref[...] = jnp.zeros_like(ksum_ref)

    ksum_ref[...] += jnp.sum(kt, axis=-1, keepdims=True)   # (Bb, D, 1)

    # On the last key tile, emit the tensor-core output:
    #   out[b,i,r] = sum_{t<T} (0.5/temp)(w1+w2)[t] Q[b,i,t] Ksum[b,t] V[b,t,r]
    # realized as scaling V's rows by (w * Ksum) then one MXU matmul.
    # Correctness of the full-width contraction relies on w[t] == 0 for t >= T
    # whenever the V rows beyond T are padding (see wrapper).
    @pl.when(kb == pl.num_programs(1) - 1)
    def _():
        scale = w_ref[...][None] * ksum_ref[...]           # (Bb, D, 1)
        v16 = (scale * v_ref[...]).astype(jnp.bfloat16)    # (Bb, D, Dv)
        out = jnp.einsum('bld,bdr->blr', q16, v16,
                         preferred_element_type=jnp.float32)
        out_ref[...] = out.astype(out_ref.dtype)


def _vmem_capacity_bytes():
    try:
        cap = getattr(pltpu.get_tpu_info(), "vmem_capacity_bytes", None)
        if cap:
            return int(cap)
    except Exception:
        pass
    return 64 << 20          # conservative default: v7x has the smallest VMEM


def _pick_key_tile(L):
    # Tile the key axis only when the O(L^2) attn block would get large.
    if L > 1024:
        for kt in (512, 384, 256, 128):
            if L % kt == 0:
                return kt
    return L


def _block_bytes(bb, L, D, Dv, Kt, out_bytes):
    f32 = 4
    io = (D * 128 * f32                 # w (lane-padded, grid-invariant)
          + bb * L * D * f32            # q
          + bb * D * Kt * f32           # K^T tile
          + bb * D * Dv * f32           # v rows
          + bb * L * Dv * out_bytes     # out
          + bb * L * Kt * out_bytes)    # attn tile
    work = (bb * L * D * 2 + bb * D * Kt * 2 + bb * D * Dv * 2   # bf16 copies
            + bb * L * Kt * f32 + bb * L * Dv * f32              # f32 matmul results
            + bb * D * 128 * f32)                                # ksum scratch
    return 2 * io + work                # double-buffered I/O + working set


def _pick_batch_block(B, L, D, Dv, Kt, out_bytes, budget):
    # TODO(synk): prime/large B degrades to Bb=1 with many small steps; a
    #             padded-batch fallback would amortize step overhead better.
    divisors = [d for d in range(1, B + 1) if B % d == 0]
    fits = [d for d in divisors
            if _block_bytes(d, L, D, Dv, Kt, out_bytes) + (2 << 20) <= budget]
    if not fits:
        return 1
    # Keep >= 2 batch (parallel) steps whenever B >= 2 so v7x's second
    # TensorCore has work; the extra ~0.35us step is negligible on v5e/v6e.
    two_step = [d for d in fits if B // d >= 2]
    pool = two_step if (B >= 2 and two_step) else fits
    return max(pool)


def single_core_attention(q, k, v, vectors, temperature,
                          out_dtype=jnp.bfloat16):
    """Pallas implementation of SingleCoreAttention.forward (eval mode).

    Both matmuls use bf16 MXU operands with f32 accumulation; results are
    stored as `out_dtype` (bf16 by default to halve the dominant attn HBM
    writeback; pass jnp.float32 to match the module's output dtype exactly).
    """
    B, L, D = q.shape
    Dv = v.shape[2]
    T = min(D, L)
    out_bytes = jnp.dtype(out_dtype).itemsize

    # Combined core weights with 0.5/temperature folded in, zeroed for t >= T.
    w = (vectors[0] + vectors[1]).astype(jnp.float32)
    if w.shape[0] < D:
        w = jnp.pad(w, (0, D - w.shape[0]))
    w = w[:D]
    w = jnp.where(jnp.arange(D) < T, w, 0.0) * (0.5 / float(temperature))
    w = w.reshape(D, 1)

    # Pre-transpose K to (B, D, L): the attn matmul needs no RHS transpose and
    # no key padding (no Lk round-trip through HBM).
    kt = jnp.swapaxes(k, 1, 2)

    # V operand: rows indexed by the contracted feature t, D rows total.
    # Realistic case (len_q >= dimen, D sublane-aligned): pass V untouched and
    # let the BlockSpec DMA only rows [0, D) -- zero wrapper-side HBM traffic.
    if L >= D and (D % 8 == 0 or D == L):
        v_in = v
        # (rows [T, D) don't exist in the contraction here since T == D)
    else:
        # Short-sequence / unaligned fallback: rows >= T are zero-padded and
        # meet the zeroed weights, keeping the full-width matmul exact.
        # TODO(synk): this keeps one small HBM pad pass for len_q < dimen.
        v_in = jnp.pad(v[:, :T, :], ((0, 0), (0, D - T), (0, 0)))

    Kt = _pick_key_tile(L)
    nkb = L // Kt

    vmem_cap = _vmem_capacity_bytes()
    budget = int(vmem_cap * 0.45)   # ~57 MiB on 128 MiB chips, ~28 MiB on v7x
    Bb = _pick_batch_block(B, L, D, Dv, Kt, out_bytes, budget)
    grid = (B // Bb, nkb)

    # Advisory cost estimate for the XLA scheduler.
    flops = 2 * B * L * L * D + 2 * B * L * D * Dv
    bytes_accessed = int(4 * (w.size + q.size + kt.size + v_in.size)
                         + out_bytes * (B * L * Dv + B * L * L))
    cost = pl.CostEstimate(flops=int(flops), transcendentals=0,
                           bytes_accessed=bytes_accessed)

    need = _block_bytes(Bb, L, D, Dv, Kt, out_bytes) + (2 << 20)
    cp_kwargs = dict(dimension_semantics=("parallel", "arbitrary"))
    if need > (16 << 20):   # above the smallest (v5e) default scoped limit
        # Generation-aware cap: never request more than 3/4 of physical VMEM
        # (v7x only has 64 MiB total).
        cp_kwargs["vmem_limit_bytes"] = min(int(need * 5 // 4),
                                            int(vmem_cap * 3 // 4))

    out, attn = pl.pallas_call(
        _single_core_attn_kernel,
        out_shape=(
            jax.ShapeDtypeStruct((B, L, Dv), out_dtype),
            jax.ShapeDtypeStruct((B, L, L), out_dtype),
        ),
        grid=grid,
        in_specs=[
            pl.BlockSpec((D, 1), lambda b, kb: (0, 0)),            # w (invariant)
            pl.BlockSpec((Bb, L, D), lambda b, kb: (b, 0, 0)),     # q
            pl.BlockSpec((Bb, D, Kt), lambda b, kb: (b, 0, kb)),   # K^T tile
            pl.BlockSpec((Bb, D, Dv), lambda b, kb: (b, 0, 0)),    # V rows [0, D)
        ],
        out_specs=(
            pl.BlockSpec((Bb, L, Dv), lambda b, kb: (b, 0, 0)),    # out (revisited)
            pl.BlockSpec((Bb, L, Kt), lambda b, kb: (b, 0, kb)),   # attn tile
        ),
        scratch_shapes=[pltpu.VMEM((Bb, D, 1), jnp.float32)],      # Ksum accum
        compiler_params=pltpu.CompilerParams(**cp_kwargs),
        cost_estimate=cost,
    )(w, q, kt, v_in)

    return out, attn


def _reference(q, k, v, vectors, temperature):
    """Plain-JAX replica of the PyTorch forward (eval mode) for verification."""
    B, L, D = q.shape
    T = min(D, L)
    idx = jnp.arange(T)
    cores1 = jnp.zeros((D, D, L), jnp.float32).at[idx, idx, idx].set(vectors[0, :T])
    cores2 = jnp.zeros((D, D, L), jnp.float32).at[idx, idx, idx].set(vectors[1, :T])
    fm1 = jnp.einsum('pqk,bip,bjq,bkr->bijr', cores1, q, k, v)
    fm2 = jnp.einsum('pqk,bip,bjq,bkr->bijr', cores2, q, k, v)
    avg = (fm1.sum(axis=2) + fm2.sum(axis=2)) * 0.5 / temperature
    attn = jnp.einsum('bid,bjd->bij', q, k)
    return avg, attn


def _run_case(seed, B, L, D):
    d_v = D
    temperature = float(jnp.sqrt(jnp.float32(D)))
    key = jax.random.PRNGKey(seed)
    kq, kk, kv, kc1, kc2 = jax.random.split(key, 5)
    q = jax.random.normal(kq, (B, L, D), dtype=jnp.float32)
    k = jax.random.normal(kk, (B, L, D), dtype=jnp.float32)
    v = jax.random.normal(kv, (B, L, D), dtype=jnp.float32)

    # Deterministic "parameter" init mirroring __init__: softmax(randn(d_v)).
    core_1 = jax.nn.softmax(jax.random.normal(kc1, (d_v,), dtype=jnp.float32))
    core_2 = jax.nn.softmax(jax.random.normal(kc2, (d_v,), dtype=jnp.float32))
    vectors = jnp.stack((core_1, core_2), axis=0)

    out, attn = single_core_attention(q, k, v, vectors, temperature)
    out, attn = jax.block_until_ready((out, attn))

    ref_out, ref_attn = _reference(q, k, v, vectors, temperature)
    assert out.shape == ref_out.shape and attn.shape == ref_attn.shape
    # Tolerances account for bf16 MXU operands + bf16 output storage.
    assert jnp.allclose(out, ref_out, atol=2e-2, rtol=5e-2), "output mismatch"
    assert jnp.allclose(attn, ref_attn, atol=2.5e-1, rtol=5e-2), "attn mismatch"


if __name__ == "__main__":
    # Primary small case, consistent with the module: (mb_size, len_q, dimen).
    _run_case(seed=0, B=2, L=8, D=32)    # len_q < dimen (padded-V fallback path)
    _run_case(seed=0, B=2, L=16, D=8)    # len_q >= dimen (zero-copy V path)
    print("KERNEL_OK")
</pallas_src>

<mosaic_0001>
module attributes {stable_mosaic.version = 11 : i64} {
  func.func @_single_core_attn_kernel(%arg0: i32, %arg1: i32, %arg2: memref<32x1xf32, #tpu.memory_space<vmem>>, %arg3: memref<1x8x32xf32, #tpu.memory_space<vmem>>, %arg4: memref<1x32x8xf32, #tpu.memory_space<vmem>>, %arg5: memref<1x32x32xf32, #tpu.memory_space<vmem>>, %arg6: memref<1x8x32xbf16, #tpu.memory_space<vmem>>, %arg7: memref<1x8x8xbf16, #tpu.memory_space<vmem>>, %arg8: memref<1x32x1xf32, #tpu.memory_space<vmem>>) attributes {dimension_semantics = [#tpu.dimension_semantics<parallel>, #tpu.dimension_semantics<arbitrary>], iteration_bounds = array<i64: 2, 1>, scalar_prefetch = 0 : i64, scratch_operands = 1 : i64, tpu.core_type = #tpu.core_type<tc>, window_params = [{pipeline_mode = #tpu.pipeline_mode<synchronous>, transform_indices = @transform_0, window_bounds = array<i64: 32, 1>}, {transform_indices = @transform_1, window_bounds = array<i64: 1, 8, 32>}, {transform_indices = @transform_2, window_bounds = array<i64: 1, 32, 8>}, {transform_indices = @transform_3, window_bounds = array<i64: 1, 32, 32>}, {transform_indices = @transform_4, window_bounds = array<i64: 1, 8, 32>}, {transform_indices = @transform_5, window_bounds = array<i64: 1, 8, 8>}]} {
    %c0 = arith.constant 0 : index
    %c0_0 = arith.constant 0 : index
    %c0_1 = arith.constant 0 : index
    %0 = vector.load %arg3[%c0, %c0_0, %c0_1] : memref<1x8x32xf32, #tpu.memory_space<vmem>>, vector<1x8x32xf32>
    %1 = arith.truncf %0 : vector<1x8x32xf32> to vector<1x8x32xbf16>
    %c0_2 = arith.constant 0 : index
    %c0_3 = arith.constant 0 : index
    %c0_4 = arith.constant 0 : index
    %2 = vector.load %arg4[%c0_2, %c0_3, %c0_4] : memref<1x32x8xf32, #tpu.memory_space<vmem>>, vector<1x32x8xf32>
    %3 = arith.truncf %2 : vector<1x32x8xf32> to vector<1x32x8xbf16>
    "tpu.trace_start"() <{level = 10 : i32, message = "bld,bdk->blk"}> : () -> ()
    %cst = arith.constant dense<0.000000e+00> : vector<1x8x8xf32>
    %4 = tpu.matmul %1, %3, %cst {dimension_numbers = #tpu.dot_dimension_numbers<[2], [1], [1], [2], [0, 0, 0, 1, 1, 2], [0], [0]>} : vector<1x8x32xbf16>, vector<1x32x8xbf16>, vector<1x8x8xf32> -> vector<1x8x8xf32>
    "tpu.trace_stop"() : () -> ()
    %5 = arith.truncf %4 : vector<1x8x8xf32> to vector<1x8x8xbf16>
    %c0_5 = arith.constant 0 : index
    %c0_6 = arith.constant 0 : index
    %c0_7 = arith.constant 0 : index
    %6 = vector.load %arg7[%c0_5, %c0_6, %c0_7] : memref<1x8x8xbf16, #tpu.memory_space<vmem>>, vector<1x8x8xbf16>
    tpu.vector_store %arg7[%c0_5, %c0_6, %c0_7], %5 {strides = array<i32>} : memref<1x8x8xbf16, #tpu.memory_space<vmem>>, vector<1x8x8xbf16>,
    %c0_i32 = arith.constant 0 : i32
    %7 = arith.cmpi eq, %arg1, %c0_i32 : i32
    %8 = arith.extui %7 : i1 to i32
    %c0_i32_8 = arith.constant 0 : i32
    %9 = arith.cmpi ne, %8, %c0_i32_8 : i32
    scf.if %9 {
      %cst_18 = arith.constant 0.000000e+00 : f32
      %18 = vector.broadcast %cst_18 : f32 to vector<1x32x1xf32>
      %c0_19 = arith.constant 0 : index
      %c0_20 = arith.constant 0 : index
      %c0_21 = arith.constant 0 : index
      %19 = vector.load %arg8[%c0_19, %c0_20, %c0_21] : memref<1x32x1xf32, #tpu.memory_space<vmem>>, vector<1x32x1xf32>
      tpu.vector_store %arg8[%c0_19, %c0_20, %c0_21], %18 {strides = array<i32>} : memref<1x32x1xf32, #tpu.memory_space<vmem>>, vector<1x32x1xf32>,
    } else {
    }
    %c0_9 = arith.constant 0 : index
    %c0_10 = arith.constant 0 : index
    %c0_11 = arith.constant 0 : index
    %10 = vector.load %arg8[%c0_9, %c0_10, %c0_11] : memref<1x32x1xf32, #tpu.memory_space<vmem>>, vector<1x32x1xf32>
    %cst_12 = arith.constant dense<0.000000e+00> : vector<1x32xf32>
    %11 = vector.multi_reduction <add>, %2, %cst_12 [2] : vector<1x32x8xf32> to vector<1x32xf32>
    %12 = vector.shape_cast %11 : vector<1x32xf32> to vector<1x32x1xf32>
    %13 = arith.addf %10, %12 : vector<1x32x1xf32>
    %c0_13 = arith.constant 0 : index
    %c0_14 = arith.constant 0 : index
    %c0_15 = arith.constant 0 : index
    %14 = vector.load %arg8[%c0_13, %c0_14, %c0_15] : memref<1x32x1xf32, #tpu.memory_space<vmem>>, vector<1x32x1xf32>
    tpu.vector_store %arg8[%c0_13, %c0_14, %c0_15], %13 {strides = array<i32>} : memref<1x32x1xf32, #tpu.memory_space<vmem>>, vector<1x32x1xf32>,
    %c0_i32_16 = arith.constant 0 : i32
    %15 = arith.cmpi eq, %arg1, %c0_i32_16 : i32
    %16 = arith.extui %15 : i1 to i32
    %c0_i32_17 = arith.constant 0 : i32
    %17 = arith.cmpi ne, %16, %c0_i32_17 : i32
    scf.if %17 {
      %c0_18 = arith.constant 0 : index
      %c0_19 = arith.constant 0 : index
      %18 = vector.load %arg2[%c0_18, %c0_19] : memref<32x1xf32, #tpu.memory_space<vmem>>, vector<32x1xf32>
      %19 = vector.shape_cast %18 : vector<32x1xf32> to vector<1x32x1xf32>
      %c0_20 = arith.constant 0 : index
      %c0_21 = arith.constant 0 : index
      %c0_22 = arith.constant 0 : index
      %20 = vector.load %arg8[%c0_20, %c0_21, %c0_22] : memref<1x32x1xf32, #tpu.memory_space<vmem>>, vector<1x32x1xf32>
      %21 = arith.mulf %19, %20 : vector<1x32x1xf32>
      %c0_23 = arith.constant 0 : index
      %c0_24 = arith.constant 0 : index
      %c0_25 = arith.constant 0 : index
      %22 = vector.load %arg5[%c0_23, %c0_24, %c0_25] : memref<1x32x32xf32, #tpu.memory_space<vmem>>, vector<1x32x32xf32>
      %23 = vector.broadcast %21 : vector<1x32x1xf32> to vector<1x32x32xf32>
      %24 = arith.mulf %23, %22 : vector<1x32x32xf32>
      %25 = arith.truncf %24 : vector<1x32x32xf32> to vector<1x32x32xbf16>
      "tpu.trace_start"() <{level = 10 : i32, message = "bld,bdr->blr"}> : () -> ()
      %cst_26 = arith.constant dense<0.000000e+00> : vector<1x8x32xf32>
      %26 = tpu.matmul %1, %25, %cst_26 {dimension_numbers = #tpu.dot_dimension_numbers<[2], [1], [1], [2], [0, 0, 0, 1, 1, 2], [0], [0]>} : vector<1x8x32xbf16>, vector<1x32x32xbf16>, vector<1x8x32xf32> -> vector<1x8x32xf32>
      "tpu.trace_stop"() : () -> ()
      %27 = arith.truncf %26 : vector<1x8x32xf32> to vector<1x8x32xbf16>
      %c0_27 = arith.constant 0 : index
      %c0_28 = arith.constant 0 : index
      %c0_29 = arith.constant 0 : index
      %28 = vector.load %arg6[%c0_27, %c0_28, %c0_29] : memref<1x8x32xbf16, #tpu.memory_space<vmem>>, vector<1x8x32xbf16>
      tpu.vector_store %arg6[%c0_27, %c0_28, %c0_29], %27 {strides = array<i32>} : memref<1x8x32xbf16, #tpu.memory_space<vmem>>, vector<1x8x32xbf16>,
    } else {
    }
    return
  }
  func.func @transform_0(%arg0: i32, %arg1: i32) -> (i32, i32) {
    %c0_i32 = arith.constant 0 : i32
    %c0_i32_0 = arith.constant 0 : i32
    %c0_i32_1 = arith.constant 0 : i32
    return %c0_i32, %c0_i32_0 : i32, i32
  }
  func.func @transform_1(%arg0: i32, %arg1: i32) -> (i32, i32, i32) {
    %c0_i32 = arith.constant 0 : i32
    %c0_i32_0 = arith.constant 0 : i32
    %c0_i32_1 = arith.constant 0 : i32
    return %arg0, %c0_i32, %c0_i32_0 : i32, i32, i32
  }
  func.func @transform_2(%arg0: i32, %arg1: i32) -> (i32, i32, i32) {
    %c0_i32 = arith.constant 0 : i32
    %c0_i32_0 = arith.constant 0 : i32
    return %arg0, %c0_i32, %arg1 : i32, i32, i32
  }
  func.func @transform_3(%arg0: i32, %arg1: i32) -> (i32, i32, i32) {
    %c0_i32 = arith.constant 0 : i32
    %c0_i32_0 = arith.constant 0 : i32
    %c0_i32_1 = arith.constant 0 : i32
    return %arg0, %c0_i32, %c0_i32_0 : i32, i32, i32
  }
  func.func @transform_4(%arg0: i32, %arg1: i32) -> (i32, i32, i32) {
    %c0_i32 = arith.constant 0 : i32
    %c0_i32_0 = arith.constant 0 : i32
    %c0_i32_1 = arith.constant 0 : i32
    return %arg0, %c0_i32, %c0_i32_0 : i32, i32, i32
  }
  func.func @transform_5(%arg0: i32, %arg1: i32) -> (i32, i32, i32) {
    %c0_i32 = arith.constant 0 : i32
    %c0_i32_0 = arith.constant 0 : i32
    return %arg0, %c0_i32, %arg1 : i32, i32, i32
  }
}

</mosaic_0001>

<llo_original>
// kernel: tpu_custom_call.1
$region0: #{tpu_custom_call.1}
  #allocation0 [shape = 'u32[]', space=smem, size = 0x4, offset = 0x4, fixed_abs, tag = 'smem constant byte address 0x4 - core index']
  #allocation1 [shape = 'u32[144,128]{1,0:T(1,128)}', space=vmem, size = 0x12000, scoped, tag = 'internal scratch']
  #allocation2 [shape = 'f32[1,32,1]{2,1,0:T(8,128)}', space=vmem, size = 0x4000, scoped, tag = 'scratch operand']
  %s0 = inlined_call_operand.vmem [shape: f32[32,1], index: 0, kind: input, shape index: {}]
  %s1 = inlined_call_operand.vmem [shape: f32[2,8,32], index: 1, kind: input, shape index: {}]
  %s2 = inlined_call_operand.vmem [shape: f32[2,32,8], index: 2, kind: input, shape index: {}]
  %s3 = inlined_call_operand.vmem [shape: f32[2,32,32], index: 3, kind: input, shape index: {}]
  %s4 = inlined_call_operand.hbm [shape: bf16[2,8,32], index: 4, kind: output, shape index: {0}]
  %s5 = inlined_call_operand.hbm [shape: bf16[2,8,8], index: 5, kind: output, shape index: {1}]
  %6 = xla_tuple %s4, %s5
  %s7 = sld [smem:[#allocation0]]
  $region65: #{tpu_custom_call.1} parent=0
    _
  %s9 = ssub.s32 1, %s7
  %s10 = scalar_select 0, %s9, %s7
  $region1: #{tpu_custom_call.1} parent=0
    #allocation3 [shape = 'u8[4096]{0}', space=vmem, size = 0x1000, scoped, tag = 'output window, operand 0']
    #allocation4 [shape = 's32[2]{0}', space=sflag, size = 0x8, scoped, tag = 'scoped memory for tpu_custom_call.1']
    #allocation5 [shape = 'u8[4096]{0}', space=vmem, size = 0x1000, scoped, tag = 'output window, operand 1']
    #allocation6 [shape = 's32[2]{0}', space=sflag, size = 0x8, scoped, tag = 'scoped memory for tpu_custom_call.1']
    %11 = vsyncpa [#allocation4], 0
    %s12 = scalar_lea.sflag [#allocation4], 1
    %13 = vsyncpa %s12, 0
    %14 = vsyncpa [#allocation6], 0
    %s15 = scalar_lea.sflag [#allocation6], 1
    %16 = vsyncpa %s15, 0
    loop: start=0, step=1, limit=4
    $region2: #{tpu_custom_call.1} parent=1 // loop_pre_header
      _
    $region3: #{tpu_custom_call.1} parent=1 // loop_header
      %s18 = sphi 0, %s22
      %p19 = scmp.ge.s32.totalorder %s18, 4
      %s25 = sphi 0, %s37
      %s26 = sphi 0, %s33
      %s27 = sphi 0, %s25
      %s28 = sphi 0, %s26
      %s29 = sphi 0, %s27
      %s30 = sphi 0, %s28
      %s38 = sphi 0, %s38
      %s40 = sphi 0, %s38
      %s41 = sphi 0, %s40
      %s55 = sphi 0, %s41
      %s61 = sphi 0, %s63
      %s64 = sphi 0, %s61
      %s65 = sphi 0, %s64
      %s81 = sphi 0, %s65
      %s89 = sphi 0, %s91
      %s92 = sphi 0, %s89
      %s93 = sphi 0, %s92
      %s109 = sphi 0, %s93
      %s115 = sphi 0, %s117
      %s118 = sphi 0, %s115
      %s119 = sphi 0, %s118
      %s135 = sphi 0, %s119
      %s141 = sphi 0, %s143
      %s144 = sphi 0, %s141
      %s145 = sphi 0, %s144
      %s161 = sphi 0, %s145
      %s169 = sphi 0, %s171
      %s172 = sphi 0, %s169
      %s173 = sphi 0, %s172
      %s189 = sphi 0, %s173
    $region4: #{tpu_custom_call.1} parent=1 // loop_header_branch
      %21 = sbr.rel (%p19) target = $region8
    $region5: #{tpu_custom_call.1} parent=1 // loop_body
      %s23 = ssub.s32 %s18, 1
      %s24 = ssub.s32 %s18, 2
      %s31 = sadd.s32 1, %s26
      %p32 = scmp.ge.s32.totalorder %s31, 1
      %s33 = scalar_select %p32, 0, %s31
      %s34 = sadd.s32 1, %s25
      %s35 = scalar_select %p32, %s34, %s25
      %p36 = scmp.ge.s32.totalorder %s35, 2
      %s37 = scalar_select %p36, 0, %s35
      %s39 = sadd.s32 %s38, 1
      %p42 = scmp.eq.s32.totalorder %s18, 1
      %p43 = scmp.ne.s32.totalorder %s38, %s40
      %p44 = scmp.eq.s32.totalorder %s18, 0
      %p45 = por %p43, %p44
      %p46 = scmp.ne.s32.totalorder %s38, %s40
      %p47 = scmp.eq.s32.totalorder %s23, 1
      %p48 = por %p46, %p47
      %p49 = scmp.ne.s32.totalorder %s40, %s41
      %p50 = scmp.eq.s32.totalorder %s23, 0
      %p51 = por %p49, %p50
      %p52 = scmp.ne.s32.totalorder %s40, %s41
      %p53 = scmp.eq.s32.totalorder %s24, 1
      %p54 = por %p52, %p53
      %p56 = scmp.ne.s32.totalorder %s41, %s55
      %p57 = scmp.eq.s32.totalorder %s24, 0
      %p58 = por %p56, %p57
      %s59 = ssub.s32 %s25, %s37
      %p60 = scmp.eq.s32.totalorder %s59, 0
      %s62 = sadd.s32 %s61, 1
      %s63 = scalar_select %p60, %s61, %s62
      %p66 = pneg %p60
      %p67 = scmp.eq.s32.totalorder %s18, 1
      %p68 = por %p66, %p67
      %p69 = scmp.ne.s32.totalorder %s61, %s64
      %p70 = scmp.eq.s32.totalorder %s18, 0
      %p71 = por %p69, %p70
      %p72 = scmp.ne.s32.totalorder %s61, %s64
      %p73 = scmp.eq.s32.totalorder %s23, 1
      %p74 = por %p72, %p73
      %p75 = scmp.ne.s32.totalorder %s64, %s65
      %p76 = scmp.eq.s32.totalorder %s23, 0
      %p77 = por %p75, %p76
      %p78 = scmp.ne.s32.totalorder %s64, %s65
      %p79 = scmp.eq.s32.totalorder %s24, 1
      %p80 = por %p78, %p79
      %p82 = scmp.ne.s32.totalorder %s65, %s81
      %p83 = scmp.eq.s32.totalorder %s24, 0
      %p84 = por %p82, %p83
      %s85 = ssub.s32 %s25, %s37
      %s86 = ssub.s32 %s26, %s33
      %s87 = sor.u32 %s85, %s86
      %p88 = scmp.eq.s32.totalorder %s87, 0
      %s90 = sadd.s32 %s89, 1
      %s91 = scalar_select %p88, %s89, %s90
      %p94 = pneg %p88
      %p95 = scmp.eq.s32.totalorder %s18, 1
      %p96 = por %p94, %p95
      %p97 = scmp.ne.s32.totalorder %s89, %s92
      %p98 = scmp.eq.s32.totalorder %s18, 0
      %p99 = por %p97, %p98
      %p100 = scmp.ne.s32.totalorder %s89, %s92
      %p101 = scmp.eq.s32.totalorder %s23, 1
      %p102 = por %p100, %p101
      %p103 = scmp.ne.s32.totalorder %s92, %s93
      %p104 = scmp.eq.s32.totalorder %s23, 0
      %p105 = por %p103, %p104
      %p106 = scmp.ne.s32.totalorder %s92, %s93
      %p107 = scmp.eq.s32.totalorder %s24, 1
      %p108 = por %p106, %p107
      %p110 = scmp.ne.s32.totalorder %s93, %s109
      %p111 = scmp.eq.s32.totalorder %s24, 0
      %p112 = por %p110, %p111
      %s113 = ssub.s32 %s25, %s37
      %p114 = scmp.eq.s32.totalorder %s113, 0
      %s116 = sadd.s32 %s115, 1
      %s117 = scalar_select %p114, %s115, %s116
      %p120 = pneg %p114
      %p121 = scmp.eq.s32.totalorder %s18, 1
      %p122 = por %p120, %p121
      %p123 = scmp.ne.s32.totalorder %s115, %s118
      %p124 = scmp.eq.s32.totalorder %s18, 0
      %p125 = por %p123, %p124
      %p126 = scmp.ne.s32.totalorder %s115, %s118
      %p127 = scmp.eq.s32.totalorder %s23, 1
      %p128 = por %p126, %p127
      %p129 = scmp.ne.s32.totalorder %s118, %s119
      %p130 = scmp.eq.s32.totalorder %s23, 0
      %p131 = por %p129, %p130
      %p132 = scmp.ne.s32.totalorder %s118, %s119
      %p133 = scmp.eq.s32.totalorder %s24, 1
      %p134 = por %p132, %p133
      %p136 = scmp.ne.s32.totalorder %s119, %s135
      %p137 = scmp.eq.s32.totalorder %s24, 0
      %p138 = por %p136, %p137
      %s139 = ssub.s32 %s25, %s37
      %p140 = scmp.eq.s32.totalorder %s139, 0
      %s142 = sadd.s32 %s141, 1
      %s143 = scalar_select %p140, %s141, %s142
      %p146 = pneg %p140
      %p147 = scmp.eq.s32.totalorder %s18, 1
      %p148 = por %p146, %p147
      %p149 = scmp.ne.s32.totalorder %s141, %s144
      %p150 = scmp.eq.s32.totalorder %s18, 0
      %p151 = por %p149, %p150
      %p152 = scmp.ne.s32.totalorder %s141, %s144
      %p153 = scmp.eq.s32.totalorder %s23, 1
      %p154 = por %p152, %p153
      %p155 = scmp.ne.s32.totalorder %s144, %s145
      %p156 = scmp.eq.s32.totalorder %s23, 0
      %p157 = por %p155, %p156
      %p158 = scmp.ne.s32.totalorder %s144, %s145
      %p159 = scmp.eq.s32.totalorder %s24, 1
      %p160 = por %p158, %p159
      %p162 = scmp.ne.s32.totalorder %s145, %s161
      %p163 = scmp.eq.s32.totalorder %s24, 0
      %p164 = por %p162, %p163
      %s165 = ssub.s32 %s25, %s37
      %s166 = ssub.s32 %s26, %s33
      %s167 = sor.u32 %s165, %s166
      %p168 = scmp.eq.s32.totalorder %s167, 0
      %s170 = sadd.s32 %s169, 1
      %s171 = scalar_select %p168, %s169, %s170
      %p174 = pneg %p168
      %p175 = scmp.eq.s32.totalorder %s18, 1
      %p176 = por %p174, %p175
      %p177 = scmp.ne.s32.totalorder %s169, %s172
      %p178 = scmp.eq.s32.totalorder %s18, 0
      %p179 = por %p177, %p178
      %p180 = scmp.ne.s32.totalorder %s169, %s172
      %p181 = scmp.eq.s32.totalorder %s23, 1
      %p182 = por %p180, %p181
      %p183 = scmp.ne.s32.totalorder %s172, %s173
      %p184 = scmp.eq.s32.totalorder %s23, 0
      %p185 = por %p183, %p184
      %p186 = scmp.ne.s32.totalorder %s172, %s173
      %p187 = scmp.eq.s32.totalorder %s24, 1
      %p188 = por %p186, %p187
      %p190 = scmp.ne.s32.totalorder %s173, %s189
      %p191 = scmp.eq.s32.totalorder %s24, 0
      %p192 = por %p190, %p191
      %p193 = scmp.le.s32.totalorder 1, %s18
      %p194 = scmp.lt.s32.totalorder %s18, 3
      %p195 = pnand %p193, %p194
      %p196 = pneg %p195
      // Predicated region
      $region9: #{tpu_custom_call.1} parent=5 // pred_check
        _
      $region10: #{tpu_custom_call.1} parent=5 // pred_check_branch
        %198 = sbr.rel (%p195) target = $region12
      $region11: #{tpu_custom_call.1} parent=5 // pred_region
        %s199 = ssub.s32 %s18, 1
        // Predicated region
        $region13: #{tpu_custom_call.1} parent=11 // pred_check
          %p200 = pneg %p51
        $region14: #{tpu_custom_call.1} parent=11 // pred_check_branch
          %202 = sbr.rel (%p200) target = $region16
        $region15: #{tpu_custom_call.1} parent=11 // pred_region
          _
        $region16: #{tpu_custom_call.1} parent=11 // pred_fallthru
          _
      $region12: #{tpu_custom_call.1} parent=5 // pred_fallthru
        _
      %p203 = scmp.lt.s32.totalorder %s18, 2
      // Predicated region
      $region17: #{tpu_custom_call.1} parent=5 // pred_check
        %p204 = pneg %p203
      $region18: #{tpu_custom_call.1} parent=5 // pred_check_branch
        %206 = sbr.rel (%p204) target = $region20
      $region19: #{tpu_custom_call.1} parent=5 // pred_region
        // Predicated region
        $region21: #{tpu_custom_call.1} parent=19 // pred_check
          %p207 = pneg %p71
        $region22: #{tpu_custom_call.1} parent=19 // pred_check_branch
          %209 = sbr.rel (%p207) target = $region24
        $region23: #{tpu_custom_call.1} parent=19 // pred_region
          %p210 = scmp.lt.s32.totalorder %s25, 1
          %s211 = scalar_select %p210, %s25, 1
          %s212 = smul.addr %s211, 8
          %s213 = scalar_lea.vmem %s1, %s212
        $region24: #{tpu_custom_call.1} parent=19 // pred_fallthru
          _
        // Predicated region
        $region25: #{tpu_custom_call.1} parent=19 // pred_check
          %p214 = pneg %p99
        $region26: #{tpu_custom_call.1} parent=19 // pred_check_branch
          %216 = sbr.rel (%p214) target = $region28
        $region27: #{tpu_custom_call.1} parent=19 // pred_region
          %p217 = scmp.lt.s32.totalorder %s25, 1
          %s218 = scalar_select %p217, %s25, 1
          %p219 = scmp.lt.s32.totalorder %s26, 0
          %s220 = scalar_select %p219, %s26, 0
          %s221 = smul.addr %s218, 4
          %s222 = sadd.s32 %s220, %s221
          %s223 = smul.addr %s222, 8
          %s224 = scalar_lea.vmem %s2, %s223
        $region28: #{tpu_custom_call.1} parent=19 // pred_fallthru
          _
        // Predicated region
        $region29: #{tpu_custom_call.1} parent=19 // pred_check
          %p225 = pneg %p125
        $region30: #{tpu_custom_call.1} parent=19 // pred_check_branch
          %227 = sbr.rel (%p225) target = $region32
        $region31: #{tpu_custom_call.1} parent=19 // pred_region
          %p228 = scmp.lt.s32.totalorder %s25, 1
          %s229 = scalar_select %p228, %s25, 1
          %s230 = smul.addr %s229, 4
          %s231 = smul.addr %s230, 8
          %s232 = scalar_lea.vmem %s3, %s231
        $region32: #{tpu_custom_call.1} parent=19 // pred_fallthru
          _
      $region20: #{tpu_custom_call.1} parent=5 // pred_fallthru
        _
      %p233 = scmp.le.s32.totalorder 1, %s18
      %p234 = scmp.lt.s32.totalorder %s18, 3
      %p235 = pnand %p233, %p234
      %p236 = pneg %p235
      // Predicated region
      $region33: #{tpu_custom_call.1} parent=5 // pred_check
        _
      $region34: #{tpu_custom_call.1} parent=5 // pred_check_branch
        %238 = sbr.rel (%p235) target = $region36
      $region35: #{tpu_custom_call.1} parent=5 // pred_region
        %s239 = ssub.s32 %s18, 1
        %p240 = pneg %p51
        %p241 = pneg %p48
        %p242 = scmp.lt.s32.totalorder %s27, 1
        %s243 = scalar_select %p242, %s27, 1
        %s244 = smul.addr %s243, 8
        %s245 = scalar_lea.vmem %s1, %s244
        %p246 = pneg %p77
        %p247 = pneg %p74
        %p248 = scmp.lt.s32.totalorder %s27, 1
        %s249 = scalar_select %p248, %s27, 1
        %p250 = scmp.lt.s32.totalorder %s28, 0
        %s251 = scalar_select %p250, %s28, 0
        %s252 = smul.addr %s249, 4
        %s253 = sadd.s32 %s251, %s252
        %s254 = smul.addr %s253, 8
        %s255 = scalar_lea.vmem %s2, %s254
        %p256 = pneg %p105
        %p257 = pneg %p102
        %p258 = scmp.lt.s32.totalorder %s27, 1
        %s259 = scalar_select %p258, %s27, 1
        %s260 = smul.addr %s259, 4
        %s261 = smul.addr %s260, 8
        %s262 = scalar_lea.vmem %s3, %s261
        %p263 = pneg %p131
        %p264 = pneg %p128
        %p265 = pneg %p157
        %p266 = pneg %p154
        %s267 = sand.u32 %s144, 1
        %s268 = scalar_lea.sflag [#allocation4], %s267
        %s269 = sand.u32 %s144, 1
        %s270 = smul.addr %s269, 4
        %s271 = scalar_lea.vmem [#allocation3], %s270
        %p272 = pneg %p185
        %p273 = pneg %p182
        %s274 = sand.u32 %s172, 1
        %s275 = scalar_lea.sflag [#allocation6], %s274
        %s276 = sand.u32 %s172, 1
        %s277 = smul.addr %s276, 4
        %s278 = scalar_lea.vmem [#allocation5], %s277
        %p279 = scmp.lt.s32.totalorder %s27, 1
        %s280 = scalar_select %p279, %s27, 1
        %s281 = smul.addr %s280, 8
        %s282 = scalar_lea.vmem %s1, %s281
        %p283 = scmp.lt.s32.totalorder %s27, 1
        %s284 = scalar_select %p283, %s27, 1
        %p285 = scmp.lt.s32.totalorder %s28, 0
        %s286 = scalar_select %p285, %s28, 0
        %s287 = smul.addr %s284, 4
        %s288 = sadd.s32 %s286, %s287
        %s289 = smul.addr %s288, 8
        %s290 = scalar_lea.vmem %s2, %s289
        %p291 = scmp.lt.s32.totalorder %s27, 1
        %s292 = scalar_select %p291, %s27, 1
        %s293 = smul.addr %s292, 4
        %s294 = smul.addr %s293, 8
        %s295 = scalar_lea.vmem %s3, %s294
        %v297 = vld [vmem:[%s282] sm:$0xff]
        %v298 = vpack.c.bf16 %v297, %v297
        %v299 = vld [vmem:[%s290] sm:$0xff]
        %v300 = vld [vmem:[%s290 + $0x8] sm:$0xff]
        %v301 = vld [vmem:[%s290 + $0x10] sm:$0xff]
        %v302 = vld [vmem:[%s290 + $0x18] sm:$0xff]
        %v303 = vpack.c.bf16 %v300, %v299
        %v304 = vpack.c.bf16 %v302, %v301
        %vm305 = vcmask 261120
        %v307 = vsel %vm305, %v298, 0
        %309 = vmatprep.subr.bf16.mxu0 0
        %310 = vmatpush1.bf16.msra.mxu0 %v303
        %311 = vmatprep.subr.bf16.mxu0 0
        %312 = vmatpush1.bf16.msra.mxu0 %v304
        %313 = vmatprep.subr.bf16.mxu0 0
        %314 = vmatpush1.bf16.msra.mxu0 0
        %315 = vmatprep.subr.bf16.mxu0 0
        %316 = vmatpush1.bf16.msra.mxu0 0
        %317 = vmatprep.subr.bf16.mxu0 0
        %318 = vmatpush1.bf16.msra.mxu0 0
        %319 = vmatprep.subr.bf16.mxu0 0
        %320 = vmatpush1.bf16.msra.mxu0 0
        %321 = vmatprep.subr.bf16.mxu0 0
        %322 = vmatpush1.bf16.msra.mxu0 0
        %323 = vmatprep.subr.bf16.mxu0 0
        %324 = vmatpush1.bf16.msra.mxu0 0
        %325 = vmatprep.subr.bf16.mxu0 0
        %326 = vmatpush1.bf16.msra.mxu0 0
        %327 = vmatprep.subr.bf16.mxu0 0
        %328 = vmatpush1.bf16.msra.mxu0 0
        %329 = vmatprep.subr.bf16.mxu0 0
        %330 = vmatpush1.bf16.msra.mxu0 0
        %331 = vmatprep.subr.bf16.mxu0 0
        %332 = vmatpush1.bf16.msra.mxu0 0
        %333 = vmatprep.subr.bf16.mxu0 0
        %334 = vmatpush1.bf16.msra.mxu0 0
        %335 = vmatprep.subr.bf16.mxu0 0
        %336 = vmatpush1.bf16.msra.mxu0 0
        %337 = vmatprep.subr.bf16.mxu0 0
        %338 = vmatpush1.bf16.msra.mxu0 0
        %339 = vmatprep.subr.bf16.mxu0 0
        %340 = vmatpush1.bf16.msra.mxu0 0
        %341 = vmatprep.mubr.bf16.mxu0 0
        %342 = vmatmul.mubr.bf16.gmra.mrb[0].mxu0 %v307
        %v343 = vpop.f32.mrb[0].mxu0
        %v344 = vadd.f32 0.0, %v343
        %v345 = vpop.f32.mrb[0].mxu0
        %v346 = vpop.f32.mrb[0].mxu0
        %v347 = vpop.f32.mrb[0].mxu0
        %348 = vdwg.mxu0
        %v349 = vpack.c.bf16 %v344, %v344
        %vm350 = vcmask 60416
        %351 = vst.msk [vmem:[%s278] sm:$0xf] %vm350, %v349
        %p352 = scmp.eq.s32.totalorder %s28, 0
        // Predicated region
        $region37: #{tpu_custom_call.1} parent=35 // pred_check
          %p353 = pneg %p352
        $region38: #{tpu_custom_call.1} parent=35 // pred_check_branch
          %355 = sbr.rel (%p353) target = $region40
        $region39: #{tpu_custom_call.1} parent=35 // pred_region
          %vm356 = vcmask 7168
          %357 = vst.msk [vmem:[#allocation2] sm:$0xff] %vm356, 0.0
          %358 = vst.msk [vmem:[#allocation2 + $0x8] sm:$0xff] %vm356, 0.0
          %359 = vst.msk [vmem:[#allocation2 + $0x10] sm:$0xff] %vm356, 0.0
          %360 = vst.msk [vmem:[#allocation2 + $0x18] sm:$0xff] %vm356, 0.0
        $region40: #{tpu_custom_call.1} parent=35 // pred_fallthru
          _
        %v361 = vld [vmem:[#allocation2] sm:$0xff]
        %v362 = vld [vmem:[#allocation2 + $0x8] sm:$0xff]
        %v363 = vld [vmem:[#allocation2 + $0x10] sm:$0xff]
        %v364 = vld [vmem:[#allocation2 + $0x18] sm:$0xff]
        %vm365 = vcmask 64512
        %v366 = vsel %vm365, %v299, 0.0
        %367 = vadd.xlane.f32.xlu0 %v366
        %v368 = vpop.xlane.xlu0 %367
        %v369 = vsel %vm365, %v300, 0.0
        %370 = vadd.xlane.f32.xlu0 %v369
        %v371 = vpop.xlane.xlu0 %370
        %v372 = vsel %vm365, %v301, 0.0
        %373 = vadd.xlane.f32.xlu0 %v372
        %v374 = vpop.xlane.xlu0 %373
        %v375 = vsel %vm365, %v302, 0.0
        %376 = vadd.xlane.f32.xlu0 %v375
        %v377 = vpop.xlane.xlu0 %376
        %v378 = vadd.f32 %v361, %v368
        %v379 = vadd.f32 %v362, %v371
        %v380 = vadd.f32 %v363, %v374
        %v381 = vadd.f32 %v364, %v377
        %vm382 = vcmask 7168
        %383 = vst.msk [vmem:[#allocation2] sm:$0xff] %vm382, %v378
        %384 = vst.msk [vmem:[#allocation2 + $0x8] sm:$0xff] %vm382, %v379
        %385 = vst.msk [vmem:[#allocation2 + $0x10] sm:$0xff] %vm382, %v380
        %386 = vst.msk [vmem:[#allocation2 + $0x18] sm:$0xff] %vm382, %v381
        // Predicated region
        $region41: #{tpu_custom_call.1} parent=35 // pred_check
          %p387 = pneg %p352
        $region42: #{tpu_custom_call.1} parent=35 // pred_check_branch
          %389 = sbr.rel (%p387) target = $region44
        $region43: #{tpu_custom_call.1} parent=35 // pred_region
          %v390 = vld [vmem:[%s0] sm:$0xff]
          %v391 = vld [vmem:[%s0 + $0x8] sm:$0xff]
          %v392 = vld [vmem:[%s0 + $0x10] sm:$0xff]
          %v393 = vld [vmem:[%s0 + $0x18] sm:$0xff]
          %v394 = vld [vmem:[#allocation2] sm:$0xff]
          %v395 = vld [vmem:[#allocation2 + $0x8] sm:$0xff]
          %v396 = vld [vmem:[#allocation2 + $0x10] sm:$0xff]
          %v397 = vld [vmem:[#allocation2 + $0x18] sm:$0xff]
          %v398 = vmul.f32 %v390, %v394
          %v399 = vmul.f32 %v391, %v395
          %v400 = vmul.f32 %v392, %v396
          %v401 = vmul.f32 %v393, %v397
          %v402 = vld [vmem:[%s295] sm:$0xff]
          %v403 = vld [vmem:[%s295 + $0x8] sm:$0xff]
          %v404 = vld [vmem:[%s295 + $0x10] sm:$0xff]
          %v405 = vld [vmem:[%s295 + $0x18] sm:$0xff]
          %407 = vset.pattern.permute.xlu0 0
          %408 = vperm.xlu0 %407, %v398
          %v409 = vpop.permute.xlu0 %408
          %412 = vset.pattern.permute.xlu0 0
          %413 = vperm.xlu0 %412, %v399
          %v414 = vpop.permute.xlu0 %413
          %417 = vset.pattern.permute.xlu0 0
          %418 = vperm.xlu0 %417, %v400
          %v419 = vpop.permute.xlu0 %418
          %422 = vset.pattern.permute.xlu0 0
          %423 = vperm.xlu0 %422, %v401
          %v424 = vpop.permute.xlu0 %423
          %v426 = vmul.f32 %v409, %v402
          %v427 = vmul.f32 %v414, %v403
          %v428 = vmul.f32 %v419, %v404
          %v429 = vmul.f32 %v424, %v405
          %v430 = vpack.c.bf16 %v427, %v426
          %v431 = vpack.c.bf16 %v429, %v428
          %432 = vmatprep.subr.bf16.mxu0 0
          %433 = vmatpush1.bf16.msra.mxu0 %v430
          %434 = vmatprep.subr.bf16.mxu0 0
          %435 = vmatpush1.bf16.msra.mxu0 %v431
          %436 = vmatprep.subr.bf16.mxu0 0
          %437 = vmatpush1.bf16.msra.mxu0 0
          %438 = vmatprep.subr.bf16.mxu0 0
          %439 = vmatpush1.bf16.msra.mxu0 0
          %440 = vmatprep.subr.bf16.mxu0 0
          %441 = vmatpush1.bf16.msra.mxu0 0
          %442 = vmatprep.subr.bf16.mxu0 0
          %443 = vmatpush1.bf16.msra.mxu0 0
          %444 = vmatprep.subr.bf16.mxu0 0
          %445 = vmatpush1.bf16.msra.mxu0 0
          %446 = vmatprep.subr.bf16.mxu0 0
          %447 = vmatpush1.bf16.msra.mxu0 0
          %448 = vmatprep.subr.bf16.mxu0 0
          %449 = vmatpush1.bf16.msra.mxu0 0
          %450 = vmatprep.subr.bf16.mxu0 0
          %451 = vmatpush1.bf16.msra.mxu0 0
          %452 = vmatprep.subr.bf16.mxu0 0
          %453 = vmatpush1.bf16.msra.mxu0 0
          %454 = vmatprep.subr.bf16.mxu0 0
          %455 = vmatpush1.bf16.msra.mxu0 0
          %456 = vmatprep.subr.bf16.mxu0 0
          %457 = vmatpush1.bf16.msra.mxu0 0
          %458 = vmatprep.subr.bf16.mxu0 0
          %459 = vmatpush1.bf16.msra.mxu0 0
          %460 = vmatprep.subr.bf16.mxu0 0
          %461 = vmatpush1.bf16.msra.mxu0 0
          %462 = vmatprep.subr.bf16.mxu0 0
          %463 = vmatpush1.bf16.msra.mxu0 0
          %464 = vmatprep.mubr.bf16.mxu0 0
          %465 = vmatmul.mubr.bf16.gmra.mrb[0].mxu0 %v307
          %v466 = vpop.f32.mrb[0].mxu0
          %v467 = vadd.f32 0.0, %v466
          %v468 = vpop.f32.mrb[0].mxu0
          %v469 = vpop.f32.mrb[0].mxu0
          %v470 = vpop.f32.mrb[0].mxu0
          %471 = vdwg.mxu0
          %v472 = vpack.c.bf16 %v467, %v467
          %vm473 = vcmask 257024
          %474 = vst.msk [vmem:[%s271] sm:$0xf] %vm473, %v472
        $region44: #{tpu_custom_call.1} parent=35 // pred_fallthru
          _
        %s475 = sand.u32 %s144, 1
        %s476 = scalar_lea.sflag [#allocation4], %s475
        %s477 = sand.u32 %s144, 1
        %s478 = smul.addr %s477, 4
        %s479 = scalar_lea.vmem [#allocation3], %s478
        %s480 = sand.u32 %s172, 1
        %s481 = scalar_lea.sflag [#allocation6], %s480
        %s482 = sand.u32 %s172, 1
        %s483 = smul.addr %s482, 4
        %s484 = scalar_lea.vmem [#allocation5], %s483
        // Predicated region
        $region45: #{tpu_custom_call.1} parent=35 // pred_check
          %p485 = pneg %p154
        $region46: #{tpu_custom_call.1} parent=35 // pred_check_branch
          %487 = sbr.rel (%p485) target = $region48
        $region47: #{tpu_custom_call.1} parent=35 // pred_region
          %s489 = ssub.s32 64, 64
          %490 = vsyncadd %s476, %s489
          %s491 = smul.addr %s27, 64
          %s492 = scalar_lea.hbm %s4, %s491
          %s494 = sshll.u32 %s479, 4
          %s495 = int_to_ptr.vmem [resolvable:$true] %s494
          %497 = dma.vmem_to_hbm [thread:$0]  %s495, 64, %s492, %s476
        $region48: #{tpu_custom_call.1} parent=35 // pred_fallthru
          _
        // Predicated region
        $region49: #{tpu_custom_call.1} parent=35 // pred_check
          %p498 = pneg %p182
        $region50: #{tpu_custom_call.1} parent=35 // pred_check_branch
          %500 = sbr.rel (%p498) target = $region52
        $region51: #{tpu_custom_call.1} parent=35 // pred_region
          %s502 = ssub.s32 64, 64
          %503 = vsyncadd %s481, %s502
          %s504 = sadd.s32 %s28, %s27
          %s505 = smul.addr %s504, 64
          %s506 = scalar_lea.hbm %s5, %s505
          %s508 = sshll.u32 %s484, 4
          %s509 = int_to_ptr.vmem [resolvable:$true] %s508
          %511 = dma.vmem_to_hbm [thread:$0]  %s509, 64, %s506, %s481
        $region52: #{tpu_custom_call.1} parent=35 // pred_fallthru
          _
      $region36: #{tpu_custom_call.1} parent=5 // pred_fallthru
        _
      %p512 = scmp.le.s32.totalorder 2, %s18
      // Predicated region
      $region53: #{tpu_custom_call.1} parent=5 // pred_check
        %p513 = pneg %p512
      $region54: #{tpu_custom_call.1} parent=5 // pred_check_branch
        %515 = sbr.rel (%p513) target = $region56
      $region55: #{tpu_custom_call.1} parent=5 // pred_region
        %s516 = ssub.s32 %s18, 2
        // Predicated region
        $region57: #{tpu_custom_call.1} parent=55 // pred_check
          %p517 = pneg %p160
        $region58: #{tpu_custom_call.1} parent=55 // pred_check_branch
          %519 = sbr.rel (%p517) target = $region60
        $region59: #{tpu_custom_call.1} parent=55 // pred_region
          %s520 = sand.u32 %s145, 1
          %s521 = scalar_lea.sflag [#allocation4], %s520
          %s522 = sand.u32 %s145, 1
          %s523 = smul.addr %s522, 4
          %s524 = scalar_lea.vmem [#allocation3], %s523
          %525 = dma.done %s521, 64
        $region60: #{tpu_custom_call.1} parent=55 // pred_fallthru
          _
        // Predicated region
        $region61: #{tpu_custom_call.1} parent=55 // pred_check
          %p526 = pneg %p188
        $region62: #{tpu_custom_call.1} parent=55 // pred_check_branch
          %528 = sbr.rel (%p526) target = $region64
        $region63: #{tpu_custom_call.1} parent=55 // pred_region
          %s529 = sand.u32 %s173, 1
          %s530 = scalar_lea.sflag [#allocation6], %s529
          %s531 = sand.u32 %s173, 1
          %s532 = smul.addr %s531, 4
          %s533 = scalar_lea.vmem [#allocation5], %s532
          %534 = dma.done %s530, 64
        $region64: #{tpu_custom_call.1} parent=55 // pred_fallthru
          _
      $region56: #{tpu_custom_call.1} parent=5 // pred_fallthru
        _
    $region6: #{tpu_custom_call.1} parent=1 // loop_footer
      %s22 = sadd.s32 1, %s18
    $region7: #{tpu_custom_call.1} parent=1 // loop_footer_branch
      %17 = sbr.rel target = $region3
    $region8: #{tpu_custom_call.1} parent=1 // loop_exit
      _
    %535 = vsyncpa [#allocation4], 1
    %s536 = scalar_lea.sflag [#allocation4], 1
    %537 = vsyncpa %s536, 1
    %538 = vsyncpa [#allocation6], 1
    %s539 = scalar_lea.sflag [#allocation6], 1
    %540 = vsyncpa %s539, 1

</llo_original>
